<compile_context>
chip_gen: v5e
topology: v5e:2x2
jax: 0.10.0
libtpu: 0.0.40
codegen_flags: <defaults>
</compile_context>

<pallas_src>
import math
from functools import partial

import jax
import jax.numpy as jnp
from jax import lax
from jax.experimental import pallas as pl
from jax.experimental.pallas import tpu as pltpu


def _round_up(x, m):
    return ((x + m - 1) // m) * m


def _gelu(x, approximate):
    if approximate:
        # tanh-approximate GELU: the transcendental runs on the EUP slot (free next to
        # MXU work).  Deviates slightly from exact nn.GELU() numerics.
        c = math.sqrt(2.0 / math.pi)
        return 0.5 * x * (1.0 + jnp.tanh(c * (x + 0.044715 * x * x * x)))
    # exact (erf-based) GELU, matching torch nn.GELU() defaults
    return 0.5 * x * (1.0 + lax.erf(x * (1.0 / math.sqrt(2.0))))


# --------------------------------------------------------------------------------------
# Kernels
# --------------------------------------------------------------------------------------
def _mlp_kernel_resident(x_ref, w1_ref, b1_ref, w2_ref, b2_ref, o_ref, *, approx_gelu):
    # Weights have a constant block index -> DMA'd from HBM once, reused for every
    # token tile.  Full fc1 -> GELU -> fc2 per tile; f32 MXU accumulation.
    h = jnp.dot(x_ref[...], w1_ref[...], preferred_element_type=jnp.float32)
    h = _gelu(h + b1_ref[...], approx_gelu)
    out = jnp.dot(h.astype(w2_ref.dtype), w2_ref[...],
                  preferred_element_type=jnp.float32)
    # drop=0.0 -> both dropouts are identity
    o_ref[...] = (out + b2_ref[...]).astype(o_ref.dtype)


def _mlp_kernel_ktiled(x_ref, w1_ref, b1_ref, w2_ref, b2_ref, o_ref, acc_ref, *,
                       approx_gelu):
    # Hidden dim tiled (reduction axis last, "arbitrary"); resident f32 accumulator.
    k = pl.program_id(1)

    @pl.when(k == 0)
    def _():
        acc_ref[...] = jnp.zeros_like(acc_ref)

    h = jnp.dot(x_ref[...], w1_ref[...], preferred_element_type=jnp.float32)
    h = _gelu(h + b1_ref[...], approx_gelu)
    acc_ref[...] += jnp.dot(h.astype(w2_ref.dtype), w2_ref[...],
                            preferred_element_type=jnp.float32)

    @pl.when(k == pl.num_programs(1) - 1)
    def _():
        # drop=0.0 -> dropout is identity
        o_ref[...] = (acc_ref[...] + b2_ref[...]).astype(o_ref.dtype)


# --------------------------------------------------------------------------------------
# Static tiling / budgeting helpers (run at trace time; everything is a Python int)
# --------------------------------------------------------------------------------------
def _vmem_cap_bytes():
    """Conservative per-kernel VMEM cap by TPU generation."""
    try:
        kind = jax.devices()[0].device_kind.lower()
    except Exception:
        kind = ""
    if any(g in kind for g in ("v4", "v5", "v6")):
        return 100 * 1024 * 1024       # 128 MiB physical parts
    return 56 * 1024 * 1024            # v7x (64 MiB physical) / unknown: stay safe


def _choose_tm(M, tm_target):
    """Fewest evenly sized multiple-of-16 token tiles of at most tm_target rows."""
    tm_target = max(16, _round_up(tm_target, 16))
    m16 = _round_up(max(M, 1), 16)     # bf16 packs two rows per sublane
    n_tiles = max(1, -(-m16 // tm_target))
    # Prefer >=2 tiles when tokens allow (>=128 rows each): shards the "parallel"
    # axis across both TensorCores on v7x at negligible cost elsewhere.
    if n_tiles == 1 and m16 >= 256:
        n_tiles = 2
    tm = _round_up(-(-M // n_tiles), 16)
    return max(16, tm)


def _choose_tk(d_hid_p, tk_target):
    """Pick tk dividing round_up(d_hid,128) so the hidden dim is never over-padded."""
    if d_hid_p <= tk_target:
        return d_hid_p
    for c in (512, 384, 256, 128):
        if c <= tk_target and d_hid_p % c == 0:
            return c
    return 128


def _footprint_resident(tm, d_in_p, d_hid_p, d_out_p, isz, osz):
    return (2 * tm * d_in_p * isz                                  # x tile (2 bufs)
            + 2 * tm * d_out_p * osz                               # out tile (2 bufs)
            + 2 * (d_in_p * d_hid_p + d_hid_p * d_out_p) * isz     # weights (2 bufs, cons.)
            + 2 * 8 * (d_hid_p + d_out_p) * 4                      # biases (sublane pad)
            + tm * d_hid_p * (4 + isz))                            # f32 GELU temp + bf16 copy


def _footprint_ktiled(tm, tk, d_in_p, d_out_p, isz, osz):
    return (2 * (tm * d_in_p * isz + d_in_p * tk * isz + 8 * tk * 4
                 + tk * d_out_p * isz + 8 * d_out_p * 4 + tm * d_out_p * osz)
            + tm * d_out_p * 4                                     # f32 accumulator scratch
            + tm * tk * (4 + isz))                                 # f32 GELU temp + bf16 copy


# --------------------------------------------------------------------------------------
# Forward
# --------------------------------------------------------------------------------------
@partial(jax.jit, static_argnames=("d_out", "tm_target", "tk_target",
                                   "approx_gelu", "force_ktiled"))
def _mlp_forward_impl(x2d, w1p, b1p, w2p, b2p, *, d_out, tm_target=512, tk_target=512,
                      approx_gelu=True, force_ktiled=False):
    M, d_in = x2d.shape
    d_in_p, d_hid_p = w1p.shape
    d_out_p = w2p.shape[1]
    cd = w1p.dtype
    out_dtype = x2d.dtype
    isz = jnp.dtype(cd).itemsize
    osz = jnp.dtype(out_dtype).itemsize

    vmem_cap = _vmem_cap_bytes()
    headroom = 1.2

    tm = _choose_tm(M, tm_target)

    # ---- path selection + (if needed) tile shrink to fit the VMEM budget ----
    resident = (not force_ktiled) and (
        _footprint_resident(tm, d_in_p, d_hid_p, d_out_p, isz, osz) * headroom <= vmem_cap)

    if resident:
        tk = d_hid_p
        footprint = _footprint_resident(tm, d_in_p, d_hid_p, d_out_p, isz, osz)
    else:
        tk = _choose_tk(d_hid_p, tk_target)
        while True:
            footprint = _footprint_ktiled(tm, tk, d_in_p, d_out_p, isz, osz)
            if footprint * headroom <= vmem_cap or (tm <= 128 and tk <= 128):
                break
            if tm > 128:
                tm = max(128, _round_up(tm // 2, 16))
            else:
                tk = 128

    M_p = _round_up(M, tm)
    vmem_limit = int(min(vmem_cap, max(int(footprint * 1.4), 32 * 1024 * 1024)))

    # ---- pad/cast x only when actually needed (static check) ----
    if (M_p != M) or (d_in_p != d_in):
        xp = jnp.zeros((M_p, d_in_p), cd).at[:M, :d_in].set(x2d.astype(cd))
    else:
        xp = x2d.astype(cd)

    # ---- grid spec per path ----
    if resident:
        grid = (M_p // tm,)
        kernel = partial(_mlp_kernel_resident, approx_gelu=approx_gelu)
        grid_spec = pltpu.PrefetchScalarGridSpec(
            num_scalar_prefetch=0,
            grid=grid,
            in_specs=[
                pl.BlockSpec((tm, d_in_p), lambda i: (i, 0)),
                pl.BlockSpec((d_in_p, d_hid_p), lambda i: (0, 0)),   # constant -> DMA once
                pl.BlockSpec((1, d_hid_p), lambda i: (0, 0)),
                pl.BlockSpec((d_hid_p, d_out_p), lambda i: (0, 0)),  # constant -> DMA once
                pl.BlockSpec((1, d_out_p), lambda i: (0, 0)),
            ],
            out_specs=pl.BlockSpec((tm, d_out_p), lambda i: (i, 0)),
        )
        dims = ("parallel",)
        n_w_streams = 1
    else:
        grid = (M_p // tm, d_hid_p // tk)
        kernel = partial(_mlp_kernel_ktiled, approx_gelu=approx_gelu)
        grid_spec = pltpu.PrefetchScalarGridSpec(
            num_scalar_prefetch=0,
            grid=grid,
            in_specs=[
                pl.BlockSpec((tm, d_in_p), lambda i, k: (i, 0)),
                pl.BlockSpec((d_in_p, tk), lambda i, k: (0, k)),
                pl.BlockSpec((1, tk), lambda i, k: (0, k)),
                pl.BlockSpec((tk, d_out_p), lambda i, k: (k, 0)),
                pl.BlockSpec((1, d_out_p), lambda i, k: (0, 0)),
            ],
            out_specs=pl.BlockSpec((tm, d_out_p), lambda i, k: (i, 0)),
            scratch_shapes=[pltpu.VMEM((tm, d_out_p), jnp.float32)],
        )
        dims = ("parallel", "arbitrary")
        n_w_streams = M_p // tm

    cost = pl.CostEstimate(
        flops=2 * M_p * d_hid_p * (d_in_p + d_out_p),
        transcendentals=M_p * d_hid_p,
        bytes_accessed=(
            M_p * d_in_p * isz
            + n_w_streams * (d_in_p * d_hid_p + d_hid_p * d_out_p) * isz
            + n_w_streams * (d_hid_p + d_out_p) * 4
            + M_p * d_out_p * osz
        ),
    )

    out = pl.pallas_call(
        kernel,
        out_shape=jax.ShapeDtypeStruct((M_p, d_out_p), out_dtype),
        grid_spec=grid_spec,
        compiler_params=pltpu.CompilerParams(
            dimension_semantics=dims,
            vmem_limit_bytes=vmem_limit,
        ),
        cost_estimate=cost,
    )(xp, w1p, b1p, w2p, b2p)

    if (M_p != M) or (d_out_p != d_out):
        out = out[:M, :d_out]
    return out


def prepare_mlp_params(w1, b1, w2, b2, compute_dtype=jnp.bfloat16):
    """Pad feature dims to multiples of 128 and cast weights to the compute dtype ONCE,
    outside the per-call forward.  Weights stored transposed vs torch.nn.Linear:
    w1: (d_in, d_hid), w2: (d_hid, d_out).  Bias/weight padding MUST stay zero (padded
    hidden lanes give GELU(0)=0 and padded W2 rows are zero -> no leakage)."""
    d_in, d_hid = w1.shape
    d_out = w2.shape[1]
    d_in_p, d_hid_p, d_out_p = (_round_up(d, 128) for d in (d_in, d_hid, d_out))
    cd = compute_dtype

    def pad2(a, r, c):
        a = a.astype(cd)
        if a.shape == (r, c):
            return a
        return jnp.zeros((r, c), cd).at[:a.shape[0], :a.shape[1]].set(a)

    def pad1(a, c):
        a = a.astype(jnp.float32).reshape(1, -1)
        if a.shape[1] == c:
            return a
        return jnp.zeros((1, c), jnp.float32).at[:, :a.shape[1]].set(a)

    return dict(
        w1p=pad2(w1, d_in_p, d_hid_p),
        b1p=pad1(b1, d_hid_p),
        w2p=pad2(w2, d_hid_p, d_out_p),
        b2p=pad1(b2, d_out_p),
        d_out=d_out,
    )


def mlp_forward(x, params, *, tm_target=512, tk_target=512, approx_gelu=True,
                force_ktiled=False):
    """x: (..., d_in) -> (..., d_out).  `params` from prepare_mlp_params."""
    d_in = x.shape[-1]
    lead = x.shape[:-1]
    x2d = x.reshape(-1, d_in)
    out2d = _mlp_forward_impl(
        x2d, params["w1p"], params["b1p"], params["w2p"], params["b2p"],
        d_out=params["d_out"], tm_target=tm_target, tk_target=tk_target,
        approx_gelu=approx_gelu, force_ktiled=force_ktiled)
    return out2d.reshape(*lead, params["d_out"])


def init_mlp_params(key, in_features, hidden_features, out_features):
    """Deterministic synthetic init (PyTorch-like uniform fan-in bounds)."""
    k1, k2, k3, k4 = jax.random.split(key, 4)
    bound1 = 1.0 / math.sqrt(in_features)
    bound2 = 1.0 / math.sqrt(hidden_features)
    w1 = jax.random.uniform(k1, (in_features, hidden_features), jnp.float32, -bound1, bound1)
    b1 = jax.random.uniform(k2, (hidden_features,), jnp.float32, -bound1, bound1)
    w2 = jax.random.uniform(k3, (hidden_features, out_features), jnp.float32, -bound2, bound2)
    b2 = jax.random.uniform(k4, (out_features,), jnp.float32, -bound2, bound2)
    return w1, b1, w2, b2


if __name__ == "__main__":
    key = jax.random.PRNGKey(0)
    kx, kp = jax.random.split(key)

    # Small transformer-style shapes: batch=2, seq=8, in_features=32, hidden=64.
    B, N = 2, 8
    in_features, hidden_features = 32, 64
    out_features = in_features          # Mlp default: out_features or in_features

    x = jax.random.normal(kx, (B, N, in_features), jnp.float32)
    w1, b1, w2, b2 = init_mlp_params(kp, in_features, hidden_features, out_features)

    # One-time weight padding/cast (outside the per-call forward).
    params = prepare_mlp_params(w1, b1, w2, b2)

    # Reference in plain JAX (f32, exact erf GELU; dropout p=0.0 is identity).
    h_ref = jnp.dot(x, w1) + b1
    h_ref = 0.5 * h_ref * (1.0 + lax.erf(h_ref / math.sqrt(2.0)))
    out_ref = jnp.dot(h_ref, w2) + b2

    # Path A: weight-resident (auto-selected for these shapes), tanh-approx GELU default.
    # bf16 weights + tanh GELU -> loosened tolerance.
    out_a = mlp_forward(x, params)
    jax.block_until_ready(out_a)
    assert out_a.shape == (B, N, out_features)
    assert jnp.allclose(out_a, out_ref, atol=4e-2, rtol=4e-2), "resident path mismatch"

    # Path B: hidden-tiled fallback (forced) with exact erf GELU, to exercise that path too.
    out_b = mlp_forward(x, params, force_ktiled=True, approx_gelu=False)
    jax.block_until_ready(out_b)
    assert jnp.allclose(out_b, out_ref, atol=3e-2, rtol=3e-2), "k-tiled path mismatch"

    print("KERNEL_OK")
</pallas_src>

<mosaic_0001>
module attributes {stable_mosaic.version = 11 : i64} {
  func.func @_mlp_kernel_resident(%arg0: i32, %arg1: memref<16x128xbf16, #tpu.memory_space<vmem>>, %arg2: memref<128x128xbf16, #tpu.memory_space<vmem>>, %arg3: memref<1x128xf32, #tpu.memory_space<vmem>>, %arg4: memref<128x128xbf16, #tpu.memory_space<vmem>>, %arg5: memref<1x128xf32, #tpu.memory_space<vmem>>, %arg6: memref<16x128xf32, #tpu.memory_space<vmem>>) attributes {dimension_semantics = [#tpu.dimension_semantics<parallel>], iteration_bounds = array<i64: 1>, scalar_prefetch = 0 : i64, scratch_operands = 0 : i64, tpu.core_type = #tpu.core_type<tc>, window_params = [{transform_indices = @transform_0, window_bounds = array<i64: 16, 128>}, {pipeline_mode = #tpu.pipeline_mode<synchronous>, transform_indices = @transform_1, window_bounds = array<i64: 128, 128>}, {pipeline_mode = #tpu.pipeline_mode<synchronous>, transform_indices = @transform_2, window_bounds = array<i64: 1, 128>}, {pipeline_mode = #tpu.pipeline_mode<synchronous>, transform_indices = @transform_3, window_bounds = array<i64: 128, 128>}, {pipeline_mode = #tpu.pipeline_mode<synchronous>, transform_indices = @transform_4, window_bounds = array<i64: 1, 128>}, {transform_indices = @transform_5, window_bounds = array<i64: 16, 128>}]} {
    %c0 = arith.constant 0 : index
    %c0_0 = arith.constant 0 : index
    %0 = vector.load %arg1[%c0, %c0_0] : memref<16x128xbf16, #tpu.memory_space<vmem>>, vector<16x128xbf16>
    %c0_1 = arith.constant 0 : index
    %c0_2 = arith.constant 0 : index
    %1 = vector.load %arg2[%c0_1, %c0_2] : memref<128x128xbf16, #tpu.memory_space<vmem>>, vector<128x128xbf16>
    %cst = arith.constant dense<0.000000e+00> : vector<16x128xf32>
    %2 = tpu.matmul %0, %1, %cst {dimension_numbers = #tpu.dot_dimension_numbers<[1], [0], [0], [1], [0, 0, 1, 1], [], []>} : vector<16x128xbf16>, vector<128x128xbf16>, vector<16x128xf32> -> vector<16x128xf32>
    %c0_3 = arith.constant 0 : index
    %c0_4 = arith.constant 0 : index
    %3 = vector.load %arg3[%c0_3, %c0_4] : memref<1x128xf32, #tpu.memory_space<vmem>>, vector<1x128xf32>
    %4 = vector.broadcast %3 : vector<1x128xf32> to vector<16x128xf32>
    %5 = arith.addf %2, %4 : vector<16x128xf32>
    %cst_5 = arith.constant 5.000000e-01 : f32
    %6 = vector.broadcast %cst_5 : f32 to vector<16x128xf32>
    %7 = arith.mulf %6, %5 : vector<16x128xf32>
    %cst_6 = arith.constant 4.471500e-02 : f32
    %8 = vector.broadcast %cst_6 : f32 to vector<16x128xf32>
    %9 = arith.mulf %8, %5 : vector<16x128xf32>
    %10 = arith.mulf %9, %5 : vector<16x128xf32>
    %11 = arith.mulf %10, %5 : vector<16x128xf32>
    %12 = arith.addf %5, %11 : vector<16x128xf32>
    %cst_7 = arith.constant 0.797884583 : f32
    %13 = vector.broadcast %cst_7 : f32 to vector<16x128xf32>
    %14 = arith.mulf %13, %12 : vector<16x128xf32>
    %15 = math.tanh %14 : vector<16x128xf32>
    %cst_8 = arith.constant 1.000000e+00 : f32
    %16 = vector.broadcast %cst_8 : f32 to vector<16x128xf32>
    %17 = arith.addf %16, %15 : vector<16x128xf32>
    %18 = arith.mulf %7, %17 : vector<16x128xf32>
    %19 = arith.truncf %18 : vector<16x128xf32> to vector<16x128xbf16>
    %c0_9 = arith.constant 0 : index
    %c0_10 = arith.constant 0 : index
    %20 = vector.load %arg4[%c0_9, %c0_10] : memref<128x128xbf16, #tpu.memory_space<vmem>>, vector<128x128xbf16>
    %cst_11 = arith.constant dense<0.000000e+00> : vector<16x128xf32>
    %21 = tpu.matmul %19, %20, %cst_11 {dimension_numbers = #tpu.dot_dimension_numbers<[1], [0], [0], [1], [0, 0, 1, 1], [], []>} : vector<16x128xbf16>, vector<128x128xbf16>, vector<16x128xf32> -> vector<16x128xf32>
    %c0_12 = arith.constant 0 : index
    %c0_13 = arith.constant 0 : index
    %22 = vector.load %arg5[%c0_12, %c0_13] : memref<1x128xf32, #tpu.memory_space<vmem>>, vector<1x128xf32>
    %23 = vector.broadcast %22 : vector<1x128xf32> to vector<16x128xf32>
    %24 = arith.addf %21, %23 : vector<16x128xf32>
    %c0_14 = arith.constant 0 : index
    %c0_15 = arith.constant 0 : index
    %25 = vector.load %arg6[%c0_14, %c0_15] : memref<16x128xf32, #tpu.memory_space<vmem>>, vector<16x128xf32>
    tpu.vector_store %arg6[%c0_14, %c0_15], %24 {strides = array<i32>} : memref<16x128xf32, #tpu.memory_space<vmem>>, vector<16x128xf32>,
    return
  }
  func.func @transform_0(%arg0: i32) -> (i32, i32) {
    %c0_i32 = arith.constant 0 : i32
    %c0_i32_0 = arith.constant 0 : i32
    return %arg0, %c0_i32 : i32, i32
  }
  func.func @transform_1(%arg0: i32) -> (i32, i32) {
    %c0_i32 = arith.constant 0 : i32
    %c0_i32_0 = arith.constant 0 : i32
    %c0_i32_1 = arith.constant 0 : i32
    return %c0_i32, %c0_i32_0 : i32, i32
  }
  func.func @transform_2(%arg0: i32) -> (i32, i32) {
    %c0_i32 = arith.constant 0 : i32
    %c0_i32_0 = arith.constant 0 : i32
    %c0_i32_1 = arith.constant 0 : i32
    return %c0_i32, %c0_i32_0 : i32, i32
  }
  func.func @transform_3(%arg0: i32) -> (i32, i32) {
    %c0_i32 = arith.constant 0 : i32
    %c0_i32_0 = arith.constant 0 : i32
    %c0_i32_1 = arith.constant 0 : i32
    return %c0_i32, %c0_i32_0 : i32, i32
  }
  func.func @transform_4(%arg0: i32) -> (i32, i32) {
    %c0_i32 = arith.constant 0 : i32
    %c0_i32_0 = arith.constant 0 : i32
    %c0_i32_1 = arith.constant 0 : i32
    return %c0_i32, %c0_i32_0 : i32, i32
  }
  func.func @transform_5(%arg0: i32) -> (i32, i32) {
    %c0_i32 = arith.constant 0 : i32
    %c0_i32_0 = arith.constant 0 : i32
    return %arg0, %c0_i32 : i32, i32
  }
}

</mosaic_0001>

<llo_original>
// kernel: _mlp_forward_impl.1
$region0: #{_mlp_forward_impl.1}
  #allocation0 [shape = 'u32[]', space=smem, size = 0x4, offset = 0x4, fixed_abs, tag = 'smem constant byte address 0x4 - core index']
  #allocation1 [shape = 'u32[72,128]{1,0:T(1,128)}', space=vmem, size = 0x9000, scoped, tag = 'internal scratch']
  %s0 = inlined_call_operand.vmem [shape: bf16[16,128], index: 0, kind: input, shape index: {}]
  %s1 = inlined_call_operand.hbm [shape: bf16[128,128], index: 1, kind: input, shape index: {}]
  %s2 = inlined_call_operand.vmem [shape: f32[1,128], index: 2, kind: input, shape index: {}]
  %s3 = inlined_call_operand.hbm [shape: bf16[128,128], index: 3, kind: input, shape index: {}]
  %s4 = inlined_call_operand.vmem [shape: f32[1,128], index: 4, kind: input, shape index: {}]
  %s5 = inlined_call_operand.hbm [shape: f32[16,128], index: 5, kind: output, shape index: {}]
  %s6 = sld [smem:[#allocation0]]
  $region38: #{_mlp_forward_impl.1} parent=0
    _
  %s8 = ssub.s32 1, %s6
  %s9 = scalar_select 0, %s8, %s6
  $region1: #{_mlp_forward_impl.1} parent=0
    #allocation2 [shape = 'u8[32768]{0}', space=vmem, size = 0x8000, scoped, tag = 'input window, operand 1, single buffered']
    #allocation3 [shape = 's32[1]{0}', space=sflag, size = 0x4, scoped, tag = 'scoped memory for _mlp_forward_impl.1']
    #allocation4 [shape = 's32[1]{0}', space=sflag, size = 0x4, scoped, tag = 'scoped memory for _mlp_forward_impl.1']
    #allocation5 [shape = 'u8[32768]{0}', space=vmem, size = 0x8000, scoped, tag = 'input window, operand 3, single buffered']
    #allocation6 [shape = 's32[1]{0}', space=sflag, size = 0x4, scoped, tag = 'scoped memory for _mlp_forward_impl.1']
    #allocation7 [shape = 'u8[8192]{0}', space=vmem, size = 0x2000, scoped, tag = 'output window, operand 0, single buffered']
    %10 = vsyncpa [#allocation3], 0
    %11 = vsyncpa [#allocation6], 0
    %12 = vsyncpa [#allocation4], 0
    // Predicated region
    $region2: #{_mlp_forward_impl.1} parent=1 // pred_check
      _
    $region3: #{_mlp_forward_impl.1} parent=1 // pred_check_branch
      %14 = sbr.rel (0) target = $region5
    $region4: #{_mlp_forward_impl.1} parent=1 // pred_region
      _
    $region5: #{_mlp_forward_impl.1} parent=1 // pred_fallthru
      _
    // Predicated region
    $region6: #{_mlp_forward_impl.1} parent=1 // pred_check
      _
    $region7: #{_mlp_forward_impl.1} parent=1 // pred_check_branch
      %16 = sbr.rel (0) target = $region9
    $region8: #{_mlp_forward_impl.1} parent=1 // pred_region
      %18 = vsyncadd [#allocation3], 0
      %s19 = sshll.u32 %s1, 4
      %s20 = int_to_ptr.hbm [resolvable:$true] %s19
      %s21 = sshll.u32 [#allocation2], 4
      %s22 = int_to_ptr.vmem [resolvable:$true] %s21
      %27 = dma.hbm_to_vmem [thread:$0]  %s20, 1024, %s22, [#allocation3], 64, 64, 4
    $region9: #{_mlp_forward_impl.1} parent=1 // pred_fallthru
      _
    // Predicated region
    $region10: #{_mlp_forward_impl.1} parent=1 // pred_check
      _
    $region11: #{_mlp_forward_impl.1} parent=1 // pred_check_branch
      %29 = sbr.rel (0) target = $region13
    $region12: #{_mlp_forward_impl.1} parent=1 // pred_region
      _
    $region13: #{_mlp_forward_impl.1} parent=1 // pred_fallthru
      _
    // Predicated region
    $region14: #{_mlp_forward_impl.1} parent=1 // pred_check
      _
    $region15: #{_mlp_forward_impl.1} parent=1 // pred_check_branch
      %31 = sbr.rel (0) target = $region17
    $region16: #{_mlp_forward_impl.1} parent=1 // pred_region
      %33 = vsyncadd [#allocation6], 0
      %s34 = sshll.u32 %s3, 4
      %s35 = int_to_ptr.hbm [resolvable:$true] %s34
      %s36 = sshll.u32 [#allocation5], 4
      %s37 = int_to_ptr.vmem [resolvable:$true] %s36
      %42 = dma.hbm_to_vmem [thread:$0]  %s35, 1024, %s37, [#allocation6], 64, 64, 4
    $region17: #{_mlp_forward_impl.1} parent=1 // pred_fallthru
      _
    // Predicated region
    $region18: #{_mlp_forward_impl.1} parent=1 // pred_check
      _
    $region19: #{_mlp_forward_impl.1} parent=1 // pred_check_branch
      %44 = sbr.rel (0) target = $region21
    $region20: #{_mlp_forward_impl.1} parent=1 // pred_region
      _
    $region21: #{_mlp_forward_impl.1} parent=1 // pred_fallthru
      _
    // Predicated region
    $region22: #{_mlp_forward_impl.1} parent=1 // pred_check
      _
    $region23: #{_mlp_forward_impl.1} parent=1 // pred_check_branch
      %46 = sbr.rel (0) target = $region25
    $region24: #{_mlp_forward_impl.1} parent=1 // pred_region
      %48 = dma.done [#allocation3], 1024
    $region25: #{_mlp_forward_impl.1} parent=1 // pred_fallthru
      _
    // Predicated region
    $region26: #{_mlp_forward_impl.1} parent=1 // pred_check
      _
    $region27: #{_mlp_forward_impl.1} parent=1 // pred_check_branch
      %50 = sbr.rel (0) target = $region29
    $region28: #{_mlp_forward_impl.1} parent=1 // pred_region
      %52 = dma.done [#allocation6], 1024
    $region29: #{_mlp_forward_impl.1} parent=1 // pred_fallthru
      _
    %v53 = vld [vmem:[%s0] sm:$0xf]
    %v54 = vld [vmem:[%s0 + $0x4] sm:$0xf]
    %v55 = vld [vmem:[#allocation2] sm:$0xf]
    %v56 = vld [vmem:[#allocation2 + $0x4] sm:$0xf]
    %v57 = vld [vmem:[#allocation2 + $0x8] sm:$0xf]
    %v58 = vld [vmem:[#allocation2 + $0xc] sm:$0xf]
    %v59 = vld [vmem:[#allocation2 + $0x10] sm:$0xf]
    %v60 = vld [vmem:[#allocation2 + $0x14] sm:$0xf]
    %v61 = vld [vmem:[#allocation2 + $0x18] sm:$0xf]
    %v62 = vld [vmem:[#allocation2 + $0x1c] sm:$0xf]
    %v63 = vld [vmem:[#allocation2 + $0x20] sm:$0xf]
    %v64 = vld [vmem:[#allocation2 + $0x24] sm:$0xf]
    %v65 = vld [vmem:[#allocation2 + $0x28] sm:$0xf]
    %v66 = vld [vmem:[#allocation2 + $0x2c] sm:$0xf]
    %v67 = vld [vmem:[#allocation2 + $0x30] sm:$0xf]
    %v68 = vld [vmem:[#allocation2 + $0x34] sm:$0xf]
    %v69 = vld [vmem:[#allocation2 + $0x38] sm:$0xf]
    %v70 = vld [vmem:[#allocation2 + $0x3c] sm:$0xf]
    %v71 = vld [vmem:[%s2] sm:$0x1]
    %v73 = vperm.slane %v71, 0
    %v77 = vunpack.c.l.b16 %v53
    %v78 = vunpack.c.l.b16 %v54
    %v79 = vpack.c.b16 %v78, %v77
    %v97 = vunpack.c.l.b16 %v55
    %v98 = vunpack.c.l.b16 %v56
    %v99 = vunpack.c.l.b16 %v57
    %v100 = vunpack.c.l.b16 %v58
    %v101 = vunpack.c.l.b16 %v59
    %v102 = vunpack.c.l.b16 %v60
    %v103 = vunpack.c.l.b16 %v61
    %v104 = vunpack.c.l.b16 %v62
    %v105 = vunpack.c.l.b16 %v63
    %v106 = vunpack.c.l.b16 %v64
    %v107 = vunpack.c.l.b16 %v65
    %v108 = vunpack.c.l.b16 %v66
    %v109 = vunpack.c.l.b16 %v67
    %v110 = vunpack.c.l.b16 %v68
    %v111 = vunpack.c.l.b16 %v69
    %v112 = vunpack.c.l.b16 %v70
    %v113 = vpack.c.b16 %v98, %v97
    %v114 = vpack.c.b16 %v100, %v99
    %v115 = vpack.c.b16 %v102, %v101
    %v116 = vpack.c.b16 %v104, %v103
    %v117 = vpack.c.b16 %v106, %v105
    %v118 = vpack.c.b16 %v108, %v107
    %v119 = vpack.c.b16 %v110, %v109
    %v120 = vpack.c.b16 %v112, %v111
    %129 = vmatpush.bf16.msra.mxu0 %v120
    %130 = vmatpush.bf16.msra.mxu0 %v119
    %131 = vmatpush.bf16.msra.mxu0 %v118
    %132 = vmatpush.bf16.msra.mxu0 %v117
    %133 = vmatpush.bf16.msra.mxu0 %v116
    %134 = vmatpush.bf16.msra.mxu0 %v115
    %135 = vmatpush.bf16.msra.mxu0 %v114
    %136 = vmatpush.bf16.msra.mxu0 %v113
    %137 = vmatmul.bf16.gmra.mxu0 %v79
    %v138 = vpop.f32.mrf.mxu0
    %v139 = vadd.f32 %v73, %v138
    %v140 = vpop.f32.mrf.mxu0
    %v141 = vadd.f32 %v73, %v140
    %142 = vdwg.mxu0
    %v143 = vmul.f32 %v139, 0.5
    %v144 = vmul.f32 %v141, 0.5
    %v145 = vmul.f32 %v139, 0.044715
    %v146 = vmul.f32 %v141, 0.044715
    %v147 = vmul.f32 %v145, %v139
    %v148 = vmul.f32 %v146, %v141
    %v149 = vmul.f32 %v147, %v139
    %v150 = vmul.f32 %v148, %v141
    %v151 = vadd.f32 %v139, %v149
    %v152 = vadd.f32 %v141, %v150
    %v153 = vmul.f32 %v151, 0.7978846
    %v154 = vmul.f32 %v152, 0.7978846
    %v155 = vtanh.pop %v153
    %v156 = vtanh.pop %v154
    %v157 = vadd.f32 %v155, 1.0
    %v158 = vadd.f32 %v156, 1.0
    %v159 = vmul.f32 %v143, %v157
    %v160 = vmul.f32 %v144, %v158
    %v161 = vpack.c.bf16 %v160, %v159
    %v162 = vld [vmem:[#allocation5] sm:$0xf]
    %v163 = vld [vmem:[#allocation5 + $0x4] sm:$0xf]
    %v164 = vld [vmem:[#allocation5 + $0x8] sm:$0xf]
    %v165 = vld [vmem:[#allocation5 + $0xc] sm:$0xf]
    %v166 = vld [vmem:[#allocation5 + $0x10] sm:$0xf]
    %v167 = vld [vmem:[#allocation5 + $0x14] sm:$0xf]
    %v168 = vld [vmem:[#allocation5 + $0x18] sm:$0xf]
    %v169 = vld [vmem:[#allocation5 + $0x1c] sm:$0xf]
    %v170 = vld [vmem:[#allocation5 + $0x20] sm:$0xf]
    %v171 = vld [vmem:[#allocation5 + $0x24] sm:$0xf]
    %v172 = vld [vmem:[#allocation5 + $0x28] sm:$0xf]
    %v173 = vld [vmem:[#allocation5 + $0x2c] sm:$0xf]
    %v174 = vld [vmem:[#allocation5 + $0x30] sm:$0xf]
    %v175 = vld [vmem:[#allocation5 + $0x34] sm:$0xf]
    %v176 = vld [vmem:[#allocation5 + $0x38] sm:$0xf]
    %v177 = vld [vmem:[#allocation5 + $0x3c] sm:$0xf]
    %v178 = vld [vmem:[%s4] sm:$0x1]
    %v180 = vperm.slane %v178, 0
    %v198 = vunpack.c.l.b16 %v162
    %v199 = vunpack.c.l.b16 %v163
    %v200 = vunpack.c.l.b16 %v164
    %v201 = vunpack.c.l.b16 %v165
    %v202 = vunpack.c.l.b16 %v166
    %v203 = vunpack.c.l.b16 %v167
    %v204 = vunpack.c.l.b16 %v168
    %v205 = vunpack.c.l.b16 %v169
    %v206 = vunpack.c.l.b16 %v170
    %v207 = vunpack.c.l.b16 %v171
    %v208 = vunpack.c.l.b16 %v172
    %v209 = vunpack.c.l.b16 %v173
    %v210 = vunpack.c.l.b16 %v174
    %v211 = vunpack.c.l.b16 %v175
    %v212 = vunpack.c.l.b16 %v176
    %v213 = vunpack.c.l.b16 %v177
    %v214 = vpack.c.b16 %v199, %v198
    %v215 = vpack.c.b16 %v201, %v200
    %v216 = vpack.c.b16 %v203, %v202
    %v217 = vpack.c.b16 %v205, %v204
    %v218 = vpack.c.b16 %v207, %v206
    %v219 = vpack.c.b16 %v209, %v208
    %v220 = vpack.c.b16 %v211, %v210
    %v221 = vpack.c.b16 %v213, %v212
    %230 = vmatpush.bf16.msra.mxu0 %v221
    %231 = vmatpush.bf16.msra.mxu0 %v220
    %232 = vmatpush.bf16.msra.mxu0 %v219
    %233 = vmatpush.bf16.msra.mxu0 %v218
    %234 = vmatpush.bf16.msra.mxu0 %v217
    %235 = vmatpush.bf16.msra.mxu0 %v216
    %236 = vmatpush.bf16.msra.mxu0 %v215
    %237 = vmatpush.bf16.msra.mxu0 %v214
    %238 = vmatmul.bf16.gmra.mxu0 %v161
    %v239 = vpop.f32.mrf.mxu0
    %v240 = vadd.f32 %v180, %v239
    %v241 = vpop.f32.mrf.mxu0
    %v242 = vadd.f32 %v180, %v241
    %243 = vdwg.mxu0
    %244 = vst [vmem:[#allocation7] sm:$0xff] %v240
    %245 = vst [vmem:[#allocation7 + $0x8] sm:$0xff] %v242
    // Predicated region
    $region30: #{_mlp_forward_impl.1} parent=1 // pred_check
      _
    $region31: #{_mlp_forward_impl.1} parent=1 // pred_check_branch
      %247 = sbr.rel (0) target = $region33
    $region32: #{_mlp_forward_impl.1} parent=1 // pred_region
      %249 = vsyncadd [#allocation4], 0
      %s250 = sshll.u32 [#allocation7], 4
      %s251 = int_to_ptr.vmem [resolvable:$true] %s250
      %s252 = sshll.u32 %s5, 4
      %s253 = int_to_ptr.hbm [resolvable:$true] %s252
      %258 = dma.vmem_to_hbm [thread:$0]  %s251, 256, %s253, [#allocation4], 128, 128, 8
    $region33: #{_mlp_forward_impl.1} parent=1 // pred_fallthru
      _
    // Predicated region
    $region34: #{_mlp_forward_impl.1} parent=1 // pred_check
      _
    $region35: #{_mlp_forward_impl.1} parent=1 // pred_check_branch
      %260 = sbr.rel (0) target = $region37
    $region36: #{_mlp_forward_impl.1} parent=1 // pred_region
      %262 = dma.done [#allocation4], 256
    $region37: #{_mlp_forward_impl.1} parent=1 // pred_fallthru
      _
    %263 = vsyncpa [#allocation3], 1
    %264 = vsyncpa [#allocation6], 1
    %265 = vsyncpa [#allocation4], 1

</llo_original>
